<compile_context>
chip_gen: v7x
topology: tpu7x:2x2x1
jax: 0.10.0
libtpu: 0.0.40
codegen_flags: <defaults>
</compile_context>

<pallas_src>
import functools

import jax
import jax.numpy as jnp
from jax.experimental import pallas as pl
from jax.experimental.pallas import tpu as pltpu


_TILE_TARGET_BYTES = 4 * 1024 * 1024  # per-step (score + label) block budget


def _pick_spatial_tile(hw, bytes_per_col, target_bytes=_TILE_TARGET_BYTES):
    """Largest multiple-of-128 divisor of hw whose block fits the byte budget."""
    if hw <= 128 or hw % 128 != 0:
        return hw                                   # fall back to a single full tile
    max_cols = max(128, (target_bytes // max(bytes_per_col, 1)) // 128 * 128)
    t = min(hw, max_cols)
    t -= t % 128
    while t >= 128:
        if hw % t == 0:
            return t
        t -= 128
    return hw


def _pdice_partial_kernel(score_ref, label_ref, out_ref, *, ignore_index):
    """One grid step = one spatial tile.

    score_ref: (B, C, T)  class scores for this tile (any float dtype).
    label_ref: (B, T)     int32 class ids (may contain ignore_index).
    out_ref  : (1, C, 3)  per-class partial [intersect, y_sum, z_sum] (f32).
    """
    B, C, T = score_ref.shape

    lab = label_ref[...]                                        # (B, T) int32

    # Class-invariant ignore mask, computed once per tile, reused for all C.
    valid = (lab != ignore_index).astype(jnp.float32)           # (B, T)
    M = jnp.sum(valid, axis=0, keepdims=True)                   # (1, T) = sum_b mask

    # Class ids along the sublane axis -> everything below is vectorized over C.
    cls = jax.lax.broadcasted_iota(jnp.int32, (C, 1), 0)        # (C, 1)

    ST = jnp.zeros((C, T), jnp.float32)                         # sum_b score * onehot
    TT = jnp.zeros((C, T), jnp.float32)                         # sum_b onehot (t*t == t)
    ZZ = jnp.zeros((C, T), jnp.float32)                         # sum_b score * score
    for b in range(B):                                          # B is small; static unroll
        sb = score_ref[b].astype(jnp.float32)                   # (C, T) cast in-VMEM (bf16 ok)
        tb = (lab[b:b + 1, :] == cls).astype(jnp.float32)       # (C, T) one-hot for batch b
        ST = ST + sb * tb
        TT = TT + tb
        ZZ = ZZ + sb * sb

    # Per-class partial sums over this tile's pixels (factorized broadcast).
    inter = jnp.sum(ST * M, axis=-1, keepdims=True)             # (C, 1)
    ysum = jnp.sum(TT * M, axis=-1, keepdims=True)              # (C, 1)
    zsum = jnp.sum(ZZ * M, axis=-1, keepdims=True)              # (C, 1)

    out_ref[0] = jnp.concatenate([inter, ysum, zsum], axis=1)   # (C, 3)


def pdice_loss(probs, target, ignore_index, weight=None, spatial_tile=None):
    """Pallas implementation of pDLoss.forward.

    probs : (B, C, H, W) float32 or bfloat16 class scores/probabilities.
    target: (B, 1, H, W) integer class ids (may contain ignore_index).
    """
    B, C, H, W = probs.shape
    assert target.shape == (B, 1, H, W), "predict & target shape do not match"
    HW = H * W

    scores = probs.reshape(B, C, HW)                 # free reshape; keep input dtype
    label = target.reshape(B, HW).astype(jnp.int32)

    bytes_per_col = B * C * probs.dtype.itemsize + B * 4  # score cols + int32 label cols
    if spatial_tile is None:
        T = _pick_spatial_tile(HW, bytes_per_col)
    else:
        T = int(spatial_tile)
        assert HW % T == 0 and (T == HW or T % 128 == 0), "bad spatial_tile"
    n_tiles = HW // T

    kernel = functools.partial(_pdice_partial_kernel, ignore_index=ignore_index)

    partials = pl.pallas_call(
        kernel,
        out_shape=jax.ShapeDtypeStruct((n_tiles, C, 3), jnp.float32),
        grid=(n_tiles,),
        in_specs=[
            pl.BlockSpec((B, C, T), lambda j: (0, 0, j)),   # lane-dense spatial tile
            pl.BlockSpec((B, T), lambda j: (0, j)),
        ],
        out_specs=pl.BlockSpec((1, C, 3), lambda j: (j, 0, 0)),
        compiler_params=pltpu.CompilerParams(
            dimension_semantics=("parallel",),              # independent tiles (2 TCs on v7x)
            vmem_limit_bytes=32 * 1024 * 1024,
        ),
    )(scores, label)

    # Tiny finalization in plain JAX: reduce tiles, dice formula, weighting, mean.
    sums = jnp.sum(partials, axis=0)                 # (C, 3)
    intersect, y_sum, z_sum = sums[:, 0], sums[:, 1], sums[:, 2]
    smooth = jnp.float32(1e-05)
    dice = jnp.float32(1.0) - (2.0 * intersect + smooth) / (z_sum + y_sum + smooth)

    if weight is None:
        w = jnp.ones((C,), jnp.float32)
    else:
        w = jnp.asarray(weight, jnp.float32)
    # TODO(synk): the PyTorch module also builds `class_wise_dice` via .item()
    # for logging only; it is not part of the returned loss, so it is omitted.
    return jnp.sum(dice * w) / jnp.float32(C)


def pdice_loss_ref(probs, target, ignore_index, weight=None):
    """Pure-JAX reference replicating the PyTorch module (incl. its broadcast)."""
    B, C, H, W = probs.shape
    tgt = target.astype(jnp.float32)                                  # (B,1,H,W)
    ignore_mask = jnp.where(tgt == ignore_index, 0.0, 1.0)            # (B,1,H,W)
    onehot = jnp.concatenate(
        [(tgt == i).astype(jnp.float32) for i in range(C)], axis=1)   # (B,C,H,W)
    if weight is None:
        weight = [1.0] * C
    smooth = 1e-05
    loss = 0.0
    for i in range(C):
        score = probs[:, i].astype(jnp.float32)                       # (B,H,W)
        t = onehot[:, i]                                              # (B,H,W)
        intersect = jnp.sum(score * t * ignore_mask)                  # -> (B,B,H,W) sum
        y_sum = jnp.sum(t * t * ignore_mask)
        z_sum = jnp.sum(score * score * ignore_mask)
        dice = 1.0 - (2.0 * intersect + smooth) / (z_sum + y_sum + smooth)
        loss = loss + dice * weight[i]
    return loss / C


if __name__ == "__main__":
    B, C, H, W = 2, 4, 16, 16
    ignore_index = 255

    key = jax.random.PRNGKey(0)
    k1, k2 = jax.random.split(key)

    logits = jax.random.normal(k1, (B, C, H, W), dtype=jnp.float32)
    probs = jax.nn.softmax(logits, axis=1)                            # (B,C,H,W)

    raw = jax.random.randint(k2, (B, 1, H, W), 0, C + 1)
    target = jnp.where(raw == C, ignore_index, raw).astype(jnp.int32)  # some ignored pixels

    ref = pdice_loss_ref(probs, target, ignore_index)

    # 1) f32 scores, single spatial tile.
    out = jax.block_until_ready(pdice_loss(probs, target, ignore_index))
    assert jnp.allclose(out, ref, rtol=1e-3, atol=1e-5), (out, ref)

    # 2) multi-tile path (force 2 spatial tiles of 128 lanes).
    out_tiled = jax.block_until_ready(
        pdice_loss(probs, target, ignore_index, spatial_tile=128))
    assert jnp.allclose(out_tiled, ref, rtol=1e-3, atol=1e-5), (out_tiled, ref)

    # 3) bf16 scores: kernel reads bf16 directly (half the HBM bytes), casts in-VMEM.
    probs_bf16 = probs.astype(jnp.bfloat16)
    out_bf16 = jax.block_until_ready(pdice_loss(probs_bf16, target, ignore_index))
    ref_bf16 = pdice_loss_ref(probs_bf16.astype(jnp.float32), target, ignore_index)
    assert jnp.allclose(out_bf16, ref_bf16, rtol=1e-3, atol=1e-5), (out_bf16, ref_bf16)

    # 4) per-class weights.
    w = jnp.array([0.5, 1.0, 2.0, 1.5], jnp.float32)
    out_w = jax.block_until_ready(pdice_loss(probs, target, ignore_index, weight=w))
    ref_w = pdice_loss_ref(probs, target, ignore_index, weight=w)
    assert jnp.allclose(out_w, ref_w, rtol=1e-3, atol=1e-5), (out_w, ref_w)

    print("KERNEL_OK")
</pallas_src>

<mosaic_0001>
module attributes {stable_mosaic.version = 11 : i64} {
  func.func @_pdice_partial_kernel(%arg0: i32, %arg1: memref<2x4x256xf32, #tpu.memory_space<vmem>>, %arg2: memref<2x256xi32, #tpu.memory_space<vmem>>, %arg3: memref<1x4x3xf32, #tpu.memory_space<vmem>>) attributes {dimension_semantics = [#tpu.dimension_semantics<parallel>], iteration_bounds = array<i64: 1>, scalar_prefetch = 0 : i64, scratch_operands = 0 : i64, tpu.core_type = #tpu.core_type<tc>, window_params = [{transform_indices = @transform_0, window_bounds = array<i64: 2, 4, 256>}, {transform_indices = @transform_1, window_bounds = array<i64: 2, 256>}, {transform_indices = @transform_2, window_bounds = array<i64: 1, 4, 3>}]} {
    %c0 = arith.constant 0 : index
    %c0_0 = arith.constant 0 : index
    %0 = vector.load %arg2[%c0, %c0_0] : memref<2x256xi32, #tpu.memory_space<vmem>>, vector<2x256xi32>
    %c255_i32 = arith.constant 255 : i32
    %1 = vector.broadcast %c255_i32 : i32 to vector<2x256xi32>
    %2 = arith.cmpi ne, %0, %1 : vector<2x256xi32>
    %3 = arith.extui %2 : vector<2x256xi1> to vector<2x256xi32>
    %4 = arith.sitofp %3 : vector<2x256xi32> to vector<2x256xf32>
    %cst = arith.constant dense<0.000000e+00> : vector<256xf32>
    %5 = vector.multi_reduction <add>, %4, %cst [0] : vector<2x256xf32> to vector<256xf32>
    %6 = vector.shape_cast %5 : vector<256xf32> to vector<1x256xf32>
    %7 = tpu.iota {dimensions = array<i32: 0>} : vector<4x1xi32>
    %cst_1 = arith.constant 0.000000e+00 : f32
    %8 = vector.broadcast %cst_1 : f32 to vector<4x256xf32>
    %cst_2 = arith.constant 0.000000e+00 : f32
    %9 = vector.broadcast %cst_2 : f32 to vector<4x256xf32>
    %cst_3 = arith.constant 0.000000e+00 : f32
    %10 = vector.broadcast %cst_3 : f32 to vector<4x256xf32>
    %c0_4 = arith.constant 0 : index
    %c0_5 = arith.constant 0 : index
    %c0_6 = arith.constant 0 : index
    %11 = vector.load %arg1[%c0_4, %c0_5, %c0_6] : memref<2x4x256xf32, #tpu.memory_space<vmem>>, vector<1x4x256xf32>
    %12 = vector.shape_cast %11 : vector<1x4x256xf32> to vector<4x256xf32>
    %13 = vector.extract_strided_slice %0 {offsets = [0, 0], sizes = [1, 256], strides = [1, 1]} : vector<2x256xi32> to vector<1x256xi32>
    %14 = vector.broadcast %13 : vector<1x256xi32> to vector<4x256xi32>
    %15 = vector.broadcast %7 : vector<4x1xi32> to vector<4x256xi32>
    %16 = arith.cmpi eq, %14, %15 : vector<4x256xi32>
    %17 = arith.extui %16 : vector<4x256xi1> to vector<4x256xi32>
    %18 = arith.sitofp %17 : vector<4x256xi32> to vector<4x256xf32>
    %19 = arith.mulf %12, %18 : vector<4x256xf32>
    %20 = arith.addf %8, %19 : vector<4x256xf32>
    %21 = arith.addf %9, %18 : vector<4x256xf32>
    %22 = arith.mulf %12, %12 : vector<4x256xf32>
    %23 = arith.addf %10, %22 : vector<4x256xf32>
    %c1 = arith.constant 1 : index
    %c0_7 = arith.constant 0 : index
    %c0_8 = arith.constant 0 : index
    %24 = vector.load %arg1[%c1, %c0_7, %c0_8] : memref<2x4x256xf32, #tpu.memory_space<vmem>>, vector<1x4x256xf32>
    %25 = vector.shape_cast %24 : vector<1x4x256xf32> to vector<4x256xf32>
    %26 = vector.extract_strided_slice %0 {offsets = [1, 0], sizes = [1, 256], strides = [1, 1]} : vector<2x256xi32> to vector<1x256xi32>
    %27 = vector.broadcast %26 : vector<1x256xi32> to vector<4x256xi32>
    %28 = vector.broadcast %7 : vector<4x1xi32> to vector<4x256xi32>
    %29 = arith.cmpi eq, %27, %28 : vector<4x256xi32>
    %30 = arith.extui %29 : vector<4x256xi1> to vector<4x256xi32>
    %31 = arith.sitofp %30 : vector<4x256xi32> to vector<4x256xf32>
    %32 = arith.mulf %25, %31 : vector<4x256xf32>
    %33 = arith.addf %20, %32 : vector<4x256xf32>
    %34 = arith.addf %21, %31 : vector<4x256xf32>
    %35 = arith.mulf %25, %25 : vector<4x256xf32>
    %36 = arith.addf %23, %35 : vector<4x256xf32>
    %37 = vector.broadcast %6 : vector<1x256xf32> to vector<4x256xf32>
    %38 = arith.mulf %33, %37 : vector<4x256xf32>
    %cst_9 = arith.constant dense<0.000000e+00> : vector<4xf32>
    %39 = vector.multi_reduction <add>, %38, %cst_9 [1] : vector<4x256xf32> to vector<4xf32>
    %40 = vector.shape_cast %39 : vector<4xf32> to vector<4x1xf32>
    %41 = vector.broadcast %6 : vector<1x256xf32> to vector<4x256xf32>
    %42 = arith.mulf %34, %41 : vector<4x256xf32>
    %cst_10 = arith.constant dense<0.000000e+00> : vector<4xf32>
    %43 = vector.multi_reduction <add>, %42, %cst_10 [1] : vector<4x256xf32> to vector<4xf32>
    %44 = vector.shape_cast %43 : vector<4xf32> to vector<4x1xf32>
    %45 = vector.broadcast %6 : vector<1x256xf32> to vector<4x256xf32>
    %46 = arith.mulf %36, %45 : vector<4x256xf32>
    %cst_11 = arith.constant dense<0.000000e+00> : vector<4xf32>
    %47 = vector.multi_reduction <add>, %46, %cst_11 [1] : vector<4x256xf32> to vector<4xf32>
    %48 = vector.shape_cast %47 : vector<4xf32> to vector<4x1xf32>
    %49 = tpu.concatenate %40, %44, %48 in 1 : vector<4x1xf32>, vector<4x1xf32>, vector<4x1xf32> -> vector<4x3xf32>
    %c0_12 = arith.constant 0 : index
    %c0_13 = arith.constant 0 : index
    %c0_14 = arith.constant 0 : index
    %50 = vector.load %arg3[%c0_12, %c0_13, %c0_14] : memref<1x4x3xf32, #tpu.memory_space<vmem>>, vector<1x4x3xf32>
    %51 = vector.shape_cast %50 : vector<1x4x3xf32> to vector<4x3xf32>
    %52 = vector.shape_cast %49 : vector<4x3xf32> to vector<1x4x3xf32>
    tpu.vector_store %arg3[%c0_12, %c0_13, %c0_14], %52 {strides = array<i32>} : memref<1x4x3xf32, #tpu.memory_space<vmem>>, vector<1x4x3xf32>,
    return
  }
  func.func @transform_0(%arg0: i32) -> (i32, i32, i32) {
    %c0_i32 = arith.constant 0 : i32
    %c0_i32_0 = arith.constant 0 : i32
    %c0_i32_1 = arith.constant 0 : i32
    return %c0_i32, %c0_i32_0, %arg0 : i32, i32, i32
  }
  func.func @transform_1(%arg0: i32) -> (i32, i32) {
    %c0_i32 = arith.constant 0 : i32
    %c0_i32_0 = arith.constant 0 : i32
    return %c0_i32, %arg0 : i32, i32
  }
  func.func @transform_2(%arg0: i32) -> (i32, i32, i32) {
    %c0_i32 = arith.constant 0 : i32
    %c0_i32_0 = arith.constant 0 : i32
    %c0_i32_1 = arith.constant 0 : i32
    return %arg0, %c0_i32, %c0_i32_0 : i32, i32, i32
  }
}

</mosaic_0001>

<llo_original>
// kernel: tpu_custom_call.1
$region0: #{tpu_custom_call.1}
  #allocation0 [shape = 'u32[]', space=smem, size = 0x4, offset = 0x4, fixed_abs, tag = 'smem constant byte address 0x4 - core index']
  #allocation1 [shape = 'u32[144,128]{1,0:T(1,128)}', space=vmem, size = 0x12000, scoped, tag = 'internal scratch']
  %s0 = inlined_call_operand.hbm [shape: f32[2,4,256], index: 0, kind: input, shape index: {}]
  %s1 = inlined_call_operand.hbm [shape: s32[2,256], index: 1, kind: input, shape index: {}]
  %s2 = inlined_call_operand.vmem [shape: f32[1,4,3], index: 2, kind: output, shape index: {}]
  %s3 = sld [smem:[#allocation0]]
  $region26: #{tpu_custom_call.1} parent=0
    _
  %s5 = ssub.s32 1, %s3
  %s6 = scalar_select 0, %s5, %s3
  $region1: #{tpu_custom_call.1} parent=0
    #allocation2 [shape = 'u8[8192]{0}', space=vmem, size = 0x2000, scoped, tag = 'input window, operand 0, single buffered']
    #allocation3 [shape = 's32[1]{0}', space=sflag, size = 0x4, scoped, tag = 'scoped memory for tpu_custom_call.1']
    #allocation4 [shape = 'u8[2048]{0}', space=vmem, size = 0x800, scoped, tag = 'input window, operand 1, single buffered']
    #allocation5 [shape = 's32[1]{0}', space=sflag, size = 0x4, scoped, tag = 'scoped memory for tpu_custom_call.1']
    %7 = vsyncpa [#allocation3], 0
    %8 = vsyncpa [#allocation5], 0
    // Predicated region
    $region2: #{tpu_custom_call.1} parent=1 // pred_check
      _
    $region3: #{tpu_custom_call.1} parent=1 // pred_check_branch
      %10 = sbr.rel (0) target = $region5
    $region4: #{tpu_custom_call.1} parent=1 // pred_region
      %s12 = ssub.s32 256, 256
      %13 = vsyncadd [#allocation3], %s12
      %s14 = sshll.u32 [#allocation2], 4
      %s15 = int_to_ptr.vmem [resolvable:$true] %s14
      %20 = dma.hbm_to_vmem [thread:$0]  %s0, 256, %s15, [#allocation3], 128, 128, 8
    $region5: #{tpu_custom_call.1} parent=1 // pred_fallthru
      _
    // Predicated region
    $region6: #{tpu_custom_call.1} parent=1 // pred_check
      _
    $region7: #{tpu_custom_call.1} parent=1 // pred_check_branch
      %22 = sbr.rel (0) target = $region9
    $region8: #{tpu_custom_call.1} parent=1 // pred_region
      %s24 = ssub.s32 64, 64
      %25 = vsyncadd [#allocation5], %s24
      %s27 = sshll.u32 [#allocation4], 4
      %s28 = int_to_ptr.vmem [resolvable:$true] %s27
      %30 = dma.hbm_to_vmem [thread:$0]  %s1, 64, %s28, [#allocation5]
    $region9: #{tpu_custom_call.1} parent=1 // pred_fallthru
      _
    // Predicated region
    $region10: #{tpu_custom_call.1} parent=1 // pred_check
      _
    $region11: #{tpu_custom_call.1} parent=1 // pred_check_branch
      %32 = sbr.rel (0) target = $region13
    $region12: #{tpu_custom_call.1} parent=1 // pred_region
      %33 = dma.done [#allocation3], 256
    $region13: #{tpu_custom_call.1} parent=1 // pred_fallthru
      _
    // Predicated region
    $region14: #{tpu_custom_call.1} parent=1 // pred_check
      _
    $region15: #{tpu_custom_call.1} parent=1 // pred_check_branch
      %35 = sbr.rel (0) target = $region17
    $region16: #{tpu_custom_call.1} parent=1 // pred_region
      %36 = dma.done [#allocation5], 64
    $region17: #{tpu_custom_call.1} parent=1 // pred_fallthru
      _
    %v37 = vld [vmem:[#allocation4] sm:$0xf]
    %vm38 = vcmp.ne.s32.totalorder %v37, 255
    %v39 = vsel %vm38, 1, 0
    %v40 = vcvt.s32.f32 %v39
    %v43 = vunpack.c.l.s4 1983009808
    %v44 = vunpack.c.0.s8 %v43
    %v45 = vlaneseq
    %v46 = vshrl.u32 %v45, 7
    %v47 = vsub.s32 %v44, %v46
    %v48 = vrot.slane %v40, %v47
    %v49 = vcombine.high %v48, %v48
    %vm52 = vcmask 1041408
    %v53 = vsel %vm52, %v48, 0.0
    %v54 = vrot.slane %v53, 4
    %v55 = vadd.f32 %v53, %v54
    %v56 = vrot.slane %v55, 2
    %v57 = vadd.f32 %v55, %v56
    %v58 = vrot.slane %v57, 1
    %v59 = vadd.f32 %v57, %v58
    %v60 = vsel %vm52, %v49, 0.0
    %v61 = vrot.slane %v60, 4
    %v62 = vadd.f32 %v60, %v61
    %v63 = vrot.slane %v62, 2
    %v64 = vadd.f32 %v62, %v63
    %v65 = vrot.slane %v64, 1
    %v66 = vadd.f32 %v64, %v65
    %v67 = vlaneseq
    %v68 = vshrl.u32 %v67, 7
    %v69 = vld [vmem:[#allocation2] sm:$0xff]
    %v70 = vlaneseq
    %v71 = vshrl.u32 %v70, 7
    %v72 = vsub.s32 0, %v71
    %v73 = vrot.slane %v37, %v72
    %v74 = vlaneseq
    %v75 = vshrl.u32 %v74, 7
    %v76 = vsub.s32 2, %v75
    %v77 = vrot.slane %v37, %v76
    %v78 = vlaneseq
    %v79 = vshrl.u32 %v78, 7
    %v80 = vsub.s32 0, %v79
    %v81 = vrot.slane %v73, %v80
    %v82 = vlaneseq
    %v83 = vshrl.u32 %v82, 7
    %v84 = vsub.s32 0, %v83
    %v85 = vrot.slane %v77, %v84
    %vm86 = vcmp.eq.s32.totalorder %v81, %v68
    %vm87 = vcmp.eq.s32.totalorder %v85, %v68
    %v88 = vsel %vm86, 1, 0
    %v89 = vsel %vm87, 1, 0
    %v90 = vcvt.s32.f32 %v88
    %v91 = vcvt.s32.f32 %v89
    %v94 = vcombine.low %v90, %v91
    %v96 = vmul.f32 %v69, %v94
    %v97 = vadd.f32 %v96, 0.0
    %v98 = vadd.f32 %v90, 0.0
    %v99 = vadd.f32 %v91, 0.0
    %v100 = vmul.f32 %v69, %v69
    %v101 = vadd.f32 %v100, 0.0
    %s102 = scalar_lea.vmem [#allocation2], 8
    %v103 = vld [vmem:[%s102] sm:$0xff]
    %v104 = vlaneseq
    %v105 = vshrl.u32 %v104, 7
    %v106 = vsub.s32 1, %v105
    %v107 = vrot.slane %v37, %v106
    %v108 = vlaneseq
    %v109 = vshrl.u32 %v108, 7
    %v110 = vsub.s32 3, %v109
    %v111 = vrot.slane %v37, %v110
    %v112 = vlaneseq
    %v113 = vshrl.u32 %v112, 7
    %v114 = vsub.s32 1, %v113
    %v115 = vrot.slane %v107, %v114
    %v116 = vlaneseq
    %v117 = vshrl.u32 %v116, 7
    %v118 = vsub.s32 1, %v117
    %v119 = vrot.slane %v111, %v118
    %vm120 = vcmp.eq.s32.totalorder %v115, %v68
    %vm121 = vcmp.eq.s32.totalorder %v119, %v68
    %v122 = vsel %vm120, 1, 0
    %v123 = vsel %vm121, 1, 0
    %v124 = vcvt.s32.f32 %v122
    %v125 = vcvt.s32.f32 %v123
    %v128 = vcombine.low %v124, %v125
    %v130 = vmul.f32 %v103, %v128
    %v131 = vadd.f32 %v97, %v130
    %v132 = vadd.f32 %v98, %v124
    %v133 = vadd.f32 %v99, %v125
    %v134 = vmul.f32 %v103, %v103
    %v135 = vadd.f32 %v101, %v134
    %v138 = vcombine.low %v59, %v66
    %v140 = vmul.f32 %v131, %v138
    %v142 = vcombine.high %v140, %v140
    %vm144 = vcmask 1043456
    %v145 = vsel %vm144, %v140, 0.0
    %v146 = vsel %vm144, %v142, 0.0
    %v147 = vadd.f32 %v145, %v146
    %148 = vadd.xlane.f32.xlu0 %v147
    %v149 = vpop.xlane.xlu0 %148
    %v150 = vmul.f32 %v132, %v59
    %v151 = vmul.f32 %v133, %v66
    %v152 = vsel %vm144, %v150, 0.0
    %v153 = vsel %vm144, %v151, 0.0
    %v154 = vadd.f32 %v152, %v153
    %155 = vadd.xlane.f32.xlu0 %v154
    %v156 = vpop.xlane.xlu0 %155
    %v157 = vmul.f32 %v135, %v138
    %v159 = vcombine.high %v157, %v157
    %v161 = vsel %vm144, %v157, 0.0
    %v162 = vsel %vm144, %v159, 0.0
    %v163 = vadd.f32 %v161, %v162
    %164 = vadd.xlane.f32.xlu0 %v163
    %v165 = vpop.xlane.xlu0 %164
    %vm166 = vcmask 7168
    %v167 = vsel %vm166, %v149, %v156
    %vm168 = vcmask 15360
    %v169 = vsel %vm168, %v167, %v165
    %vm170 = vcmask 19456
    %171 = vst.msk [vmem:[%s2] sm:$0xf] %vm170, %v169
    // Predicated region
    $region18: #{tpu_custom_call.1} parent=1 // pred_check
      _
    $region19: #{tpu_custom_call.1} parent=1 // pred_check_branch
      %173 = sbr.rel (0) target = $region21
    $region20: #{tpu_custom_call.1} parent=1 // pred_region
      _
    $region21: #{tpu_custom_call.1} parent=1 // pred_fallthru
      _
    // Predicated region
    $region22: #{tpu_custom_call.1} parent=1 // pred_check
      _
    $region23: #{tpu_custom_call.1} parent=1 // pred_check_branch
      %175 = sbr.rel (0) target = $region25
    $region24: #{tpu_custom_call.1} parent=1 // pred_region
      _
    $region25: #{tpu_custom_call.1} parent=1 // pred_fallthru
      _
    %176 = vsyncpa [#allocation3], 1
    %177 = vsyncpa [#allocation5], 1

</llo_original>
